<compile_context>
chip_gen: v7x
topology: tpu7x:2x2x1
jax: 0.10.0
libtpu: 0.0.40
codegen_flags: <defaults>
</compile_context>

<pallas_src>
import functools

import jax
import jax.numpy as jnp
from jax.experimental import pallas as pl
from jax.experimental.pallas import tpu as pltpu

# MXU-native operand dtype for the conv dots (accumulation stays f32).
_MXU_DTYPE = jnp.bfloat16


# ----------------------------------------------------------------------------
# Fused Pallas kernel: cv1(3x3,BN,SiLU) -> cv2(3x3,BN,SiLU) [-> + x]
# ----------------------------------------------------------------------------
def _bottleneck_kernel(x_ref, m_ref, w1_ref, b1_ref, w2_ref, b2_ref, o_ref,
                       xpad_ref, xcol_ref, hpad_ref, hcol_ref,
                       *, H, W, ips, pad, add):
    """One grid step = `ips` images, channels on sublanes, ips*H*W on lanes.

    x_ref   : (1, C1, L)       f32, L = ips*H*W
    m_ref   : (9, L)           f32 0/1 per-tap boundary masks (tap = kh*3 + kw)
    wN_ref  : (Cout, 9*Cin)    bf16, BN-folded, column block t = tap index
    bN_ref  : (Cout, 1)        f32, BN-folded bias
    o_ref   : (1, C2, L)       f32
    *pad_ref: (Cin, L + 2*pad) f32 halo scratch (pad is a multiple of 128 lanes)
    *col_ref: (9*Cin, L)       f32 im2col scratch
    """
    L = ips * H * W

    def conv3x3_silu(v, pad_ref, col_ref, w_ref, b_ref):
        cin = pad_ref.shape[0]
        # Zero only the two lane-aligned halo strips; the centre is overwritten.
        pad_ref[:, 0:pad] = jnp.zeros((cin, pad), jnp.float32)
        pad_ref[:, pad + L:pad + L + pad] = jnp.zeros((cin, pad), jnp.float32)
        pad_ref[:, pad:pad + L] = v                      # aligned full-lane store
        vp = pad_ref[...]                                # (cin, L + 2*pad)

        # Build the im2col stack: 9 shifted, boundary-masked slabs, written once.
        for kh in range(3):
            for kw in range(3):
                t = kh * 3 + kw
                off = pad + (kh - 1) * W + (kw - 1)
                slab = vp[:, off:off + L]                # shift by (kh-1, kw-1)
                if t != 4:                               # centre tap: no mask
                    slab = slab * m_ref[t:t + 1, :]
                col_ref[t * cin:(t + 1) * cin, :] = slab

        # Single MXU dot per conv: (Cout, 9*Cin) x (9*Cin, L), f32 accumulate.
        y = jnp.dot(w_ref[...], col_ref[...].astype(_MXU_DTYPE),
                    preferred_element_type=jnp.float32)
        y = y + b_ref[...]                               # (Cout, L) + (Cout, 1)
        return y * jax.nn.sigmoid(y)                     # SiLU, f32 elementwise

    xv = x_ref[0]                                        # (C1, L) f32
    h = conv3x3_silu(xv, xpad_ref, xcol_ref, w1_ref, b1_ref)
    y = conv3x3_silu(h, hpad_ref, hcol_ref, w2_ref, b2_ref)
    if add:                                              # shortcut and c1 == c2
        y = y + xv
    o_ref[0] = y.astype(o_ref.dtype)


# ----------------------------------------------------------------------------
# Wrapper
# ----------------------------------------------------------------------------
def _tap_masks(H, W, ips):
    """(9, L) 0/1 masks killing out-of-image taps in the flat lane layout."""
    L = ips * H * W
    lane = jnp.arange(L, dtype=jnp.int32)
    col = lane % W
    row = (lane % (H * W)) // W
    ok_l, ok_r = col >= 1, col <= W - 2
    ok_t, ok_b = row >= 1, row <= H - 2
    rows = []
    for kh in range(3):
        for kw in range(3):
            m = jnp.ones((L,), bool)
            if kh == 0:
                m = m & ok_t
            if kh == 2:
                m = m & ok_b
            if kw == 0:
                m = m & ok_l
            if kw == 2:
                m = m & ok_r
            rows.append(m)
    return jnp.stack(rows).astype(jnp.float32)


def bottleneck_forward(x_nchw, params, *, n_grid_steps=None):
    """x_nchw: (N, C1, H, W) -> (N, C2, H, W), PyTorch Bottleneck semantics."""
    w1, b1 = params["cv1"]        # OIHW f32 (BN folded), (Cout,) f32
    w2, b2 = params["cv2"]
    add = params["add"]

    N, C1, H, W = x_nchw.shape
    Cm, C2 = w1.shape[0], w2.shape[0]
    HW = H * W

    # Grid policy: keep 2 "parallel" steps when possible (both v7x TensorCores get
    # work); the rest of the batch is folded into the lane dimension.
    if n_grid_steps is None:
        n_grid_steps = 2 if (N % 2 == 0 and N >= 2) else 1
    assert N % n_grid_steps == 0
    ips = N // n_grid_steps
    L = ips * HW                                   # lane width per grid step
    pad = max(128, -(-(W + 1) // 128) * 128)       # lane-aligned halo width

    # Lane-dense layout: (n_steps, C, ips*HW).  (HW = 256 here, multiple of 128.)
    x2d = (x_nchw.reshape(n_grid_steps, ips, C1, HW)
           .transpose(0, 2, 1, 3).reshape(n_grid_steps, C1, L))

    # Weights in im2col form (Cout, 9*Cin), column block = tap kh*3+kw, bf16.
    w1k = jnp.transpose(w1, (0, 2, 3, 1)).reshape(Cm, 9 * C1).astype(_MXU_DTYPE)
    w2k = jnp.transpose(w2, (0, 2, 3, 1)).reshape(C2, 9 * Cm).astype(_MXU_DTYPE)

    masks = _tap_masks(H, W, ips)

    cost = pl.CostEstimate(
        flops=2 * 9 * (Cm * C1 + C2 * Cm) * HW * N,
        transcendentals=(Cm + C2) * HW * N,
        bytes_accessed=(x2d.size + N * C2 * HW + masks.size) * 4
                       + (w1k.size + w2k.size) * 2 + (Cm + C2) * 4)

    out2d = pl.pallas_call(
        functools.partial(_bottleneck_kernel, H=H, W=W, ips=ips, pad=pad, add=add),
        out_shape=jax.ShapeDtypeStruct((n_grid_steps, C2, L), jnp.float32),
        grid=(n_grid_steps,),
        in_specs=[
            pl.BlockSpec((1, C1, L), lambda i: (i, 0, 0)),
            pl.BlockSpec((9, L), lambda i: (0, 0)),
            pl.BlockSpec((Cm, 9 * C1), lambda i: (0, 0)),
            pl.BlockSpec((Cm, 1), lambda i: (0, 0)),
            pl.BlockSpec((C2, 9 * Cm), lambda i: (0, 0)),
            pl.BlockSpec((C2, 1), lambda i: (0, 0)),
        ],
        out_specs=pl.BlockSpec((1, C2, L), lambda i: (i, 0, 0)),
        scratch_shapes=[
            pltpu.VMEM((C1, L + 2 * pad), jnp.float32),   # x halo buffer
            pltpu.VMEM((9 * C1, L), jnp.float32),         # x im2col stack
            pltpu.VMEM((Cm, L + 2 * pad), jnp.float32),   # h halo buffer
            pltpu.VMEM((9 * Cm, L), jnp.float32),         # h im2col stack
        ],
        compiler_params=pltpu.CompilerParams(
            dimension_semantics=("parallel",)),           # batch axis -> both TCs
        cost_estimate=cost,
    )(x2d, masks, w1k, b1.reshape(Cm, 1), w2k, b2.reshape(C2, 1))

    return (out2d.reshape(n_grid_steps, C2, ips, HW)
            .transpose(0, 2, 1, 3).reshape(N, C2, H, W))


# ----------------------------------------------------------------------------
# Deterministic parameter construction (BN folded, inference form)
# ----------------------------------------------------------------------------
class _ParamGen:
    def __init__(self, seed=0):
        self.key = jax.random.PRNGKey(seed)

    def _next(self):
        self.key, k = jax.random.split(self.key)
        return k

    def normal(self, shape, scale=0.1):
        return scale * jax.random.normal(self._next(), shape, jnp.float32)

    def uniform(self, shape, lo, hi):
        return jax.random.uniform(self._next(), shape, jnp.float32, lo, hi)


def _fold_bn(pg, cout, eps=1e-5):
    gamma = pg.uniform((cout,), 0.8, 1.2)
    beta = pg.normal((cout,), 0.05)
    mean = pg.normal((cout,), 0.05)
    var = pg.uniform((cout,), 0.8, 1.2)
    s = gamma / jnp.sqrt(var + eps)
    return s, beta - s * mean


def _make_conv3x3_bn(pg, cin, cout):
    w = pg.normal((cout, cin, 3, 3), 0.2)                 # OIHW, conv bias=False
    s, b = _fold_bn(pg, cout)
    return w * s[:, None, None, None], b                  # BN scale folded into w


def init_bottleneck_params(c1, c2, shortcut=True, g=1, k=(3, 3), e=0.5, seed=0):
    assert g == 1, "grouped conv not implemented"
    assert tuple(k) == (3, 3)
    pg = _ParamGen(seed)
    c_ = int(c2 * e)
    return {
        "cv1": _make_conv3x3_bn(pg, c1, c_),
        "cv2": _make_conv3x3_bn(pg, c_, c2),
        "add": bool(shortcut and c1 == c2),
    }


# ----------------------------------------------------------------------------
# Pure-JAX reference (mirrors the kernel's bf16 operand rounding -> tight check)
# ----------------------------------------------------------------------------
def _round_mxu(v):
    return v.astype(_MXU_DTYPE).astype(jnp.float32)


def bottleneck_reference(x_nchw, params):
    def conv_bn_silu(v, w, b):
        y = jax.lax.conv_general_dilated(
            _round_mxu(v), _round_mxu(w), (1, 1), "SAME",
            dimension_numbers=("NCHW", "OIHW", "NCHW"),
            precision=jax.lax.Precision.HIGHEST)
        y = y + b[None, :, None, None]
        return y * jax.nn.sigmoid(y)

    h = conv_bn_silu(x_nchw, *params["cv1"])
    y = conv_bn_silu(h, *params["cv2"])
    return x_nchw + y if params["add"] else y


# ----------------------------------------------------------------------------
if __name__ == "__main__":
    c1, c2 = 4, 4
    params = init_bottleneck_params(c1, c2, shortcut=True, g=1, e=0.5, seed=0)

    x = jax.random.normal(jax.random.PRNGKey(0), (2, c1, 16, 16), jnp.float32)

    fwd = jax.jit(lambda inp: bottleneck_forward(inp, params))
    out = fwd(x)
    jax.block_until_ready(out)

    assert out.shape == (2, c2, 16, 16), out.shape
    assert bool(jnp.all(jnp.isfinite(out)))

    ref = bottleneck_reference(x, params)
    err = float(jnp.max(jnp.abs(out - ref)))
    assert err < 2e-2, f"max abs err vs reference: {err}"

    print("KERNEL_OK")
</pallas_src>

<mosaic_0001>
module attributes {stable_mosaic.version = 11 : i64} {
  func.func @_bottleneck_kernel(%arg0: i32, %arg1: memref<1x4x256xf32, #tpu.memory_space<vmem>>, %arg2: memref<9x256xf32, #tpu.memory_space<vmem>>, %arg3: memref<2x36xbf16, #tpu.memory_space<vmem>>, %arg4: memref<2x1xf32, #tpu.memory_space<vmem>>, %arg5: memref<4x18xbf16, #tpu.memory_space<vmem>>, %arg6: memref<4x1xf32, #tpu.memory_space<vmem>>, %arg7: memref<1x4x256xf32, #tpu.memory_space<vmem>>, %arg8: memref<4x512xf32, #tpu.memory_space<vmem>>, %arg9: memref<36x256xf32, #tpu.memory_space<vmem>>, %arg10: memref<2x512xf32, #tpu.memory_space<vmem>>, %arg11: memref<18x256xf32, #tpu.memory_space<vmem>>) attributes {dimension_semantics = [#tpu.dimension_semantics<parallel>], iteration_bounds = array<i64: 2>, scalar_prefetch = 0 : i64, scratch_operands = 4 : i64, tpu.core_type = #tpu.core_type<tc>, window_params = [{transform_indices = @transform_0, window_bounds = array<i64: 1, 4, 256>}, {pipeline_mode = #tpu.pipeline_mode<synchronous>, transform_indices = @transform_1, window_bounds = array<i64: 9, 256>}, {pipeline_mode = #tpu.pipeline_mode<synchronous>, transform_indices = @transform_2, window_bounds = array<i64: 2, 36>}, {pipeline_mode = #tpu.pipeline_mode<synchronous>, transform_indices = @transform_3, window_bounds = array<i64: 2, 1>}, {pipeline_mode = #tpu.pipeline_mode<synchronous>, transform_indices = @transform_4, window_bounds = array<i64: 4, 18>}, {pipeline_mode = #tpu.pipeline_mode<synchronous>, transform_indices = @transform_5, window_bounds = array<i64: 4, 1>}, {transform_indices = @transform_6, window_bounds = array<i64: 1, 4, 256>}]} {
    %c0 = arith.constant 0 : index
    %c0_0 = arith.constant 0 : index
    %c0_1 = arith.constant 0 : index
    %0 = vector.load %arg1[%c0, %c0_0, %c0_1] : memref<1x4x256xf32, #tpu.memory_space<vmem>>, vector<1x4x256xf32>
    %1 = vector.shape_cast %0 : vector<1x4x256xf32> to vector<4x256xf32>
    %cst = arith.constant 0.000000e+00 : f32
    %2 = vector.broadcast %cst : f32 to vector<4x128xf32>
    %c0_2 = arith.constant 0 : index
    %c0_3 = arith.constant 0 : index
    %3 = vector.load %arg8[%c0_2, %c0_3] : memref<4x512xf32, #tpu.memory_space<vmem>>, vector<4x128xf32>
    tpu.vector_store %arg8[%c0_2, %c0_3], %2 {strides = array<i32>} : memref<4x512xf32, #tpu.memory_space<vmem>>, vector<4x128xf32>,
    %cst_4 = arith.constant 0.000000e+00 : f32
    %4 = vector.broadcast %cst_4 : f32 to vector<4x128xf32>
    %c0_5 = arith.constant 0 : index
    %c384 = arith.constant 384 : index
    %5 = vector.load %arg8[%c0_5, %c384] : memref<4x512xf32, #tpu.memory_space<vmem>>, vector<4x128xf32>
    tpu.vector_store %arg8[%c0_5, %c384], %4 {strides = array<i32>} : memref<4x512xf32, #tpu.memory_space<vmem>>, vector<4x128xf32>,
    %c0_6 = arith.constant 0 : index
    %c128 = arith.constant 128 : index
    %6 = vector.load %arg8[%c0_6, %c128] : memref<4x512xf32, #tpu.memory_space<vmem>>, vector<4x256xf32>
    tpu.vector_store %arg8[%c0_6, %c128], %1 {strides = array<i32>} : memref<4x512xf32, #tpu.memory_space<vmem>>, vector<4x256xf32>,
    %c0_7 = arith.constant 0 : index
    %c0_8 = arith.constant 0 : index
    %7 = vector.load %arg8[%c0_7, %c0_8] : memref<4x512xf32, #tpu.memory_space<vmem>>, vector<4x512xf32>
    %8 = vector.extract_strided_slice %7 {offsets = [0, 111], sizes = [4, 256], strides = [1, 1]} : vector<4x512xf32> to vector<4x256xf32>
    %c0_9 = arith.constant 0 : index
    %c0_10 = arith.constant 0 : index
    %9 = vector.load %arg2[%c0_9, %c0_10] : memref<9x256xf32, #tpu.memory_space<vmem>>, vector<1x256xf32>
    %10 = vector.broadcast %9 : vector<1x256xf32> to vector<4x256xf32>
    %11 = arith.mulf %8, %10 : vector<4x256xf32>
    %c0_11 = arith.constant 0 : index
    %c0_12 = arith.constant 0 : index
    %12 = vector.load %arg9[%c0_11, %c0_12] : memref<36x256xf32, #tpu.memory_space<vmem>>, vector<4x256xf32>
    tpu.vector_store %arg9[%c0_11, %c0_12], %11 {strides = array<i32>} : memref<36x256xf32, #tpu.memory_space<vmem>>, vector<4x256xf32>,
    %13 = vector.extract_strided_slice %7 {offsets = [0, 112], sizes = [4, 256], strides = [1, 1]} : vector<4x512xf32> to vector<4x256xf32>
    %c1 = arith.constant 1 : index
    %c0_13 = arith.constant 0 : index
    %14 = vector.load %arg2[%c1, %c0_13] : memref<9x256xf32, #tpu.memory_space<vmem>>, vector<1x256xf32>
    %15 = vector.broadcast %14 : vector<1x256xf32> to vector<4x256xf32>
    %16 = arith.mulf %13, %15 : vector<4x256xf32>
    %c4 = arith.constant 4 : index
    %c0_14 = arith.constant 0 : index
    %17 = vector.load %arg9[%c4, %c0_14] : memref<36x256xf32, #tpu.memory_space<vmem>>, vector<4x256xf32>
    tpu.vector_store %arg9[%c4, %c0_14], %16 {strides = array<i32>} : memref<36x256xf32, #tpu.memory_space<vmem>>, vector<4x256xf32>,
    %18 = vector.extract_strided_slice %7 {offsets = [0, 113], sizes = [4, 256], strides = [1, 1]} : vector<4x512xf32> to vector<4x256xf32>
    %c2 = arith.constant 2 : index
    %c0_15 = arith.constant 0 : index
    %19 = vector.load %arg2[%c2, %c0_15] : memref<9x256xf32, #tpu.memory_space<vmem>>, vector<1x256xf32>
    %20 = vector.broadcast %19 : vector<1x256xf32> to vector<4x256xf32>
    %21 = arith.mulf %18, %20 : vector<4x256xf32>
    %c8 = arith.constant 8 : index
    %c0_16 = arith.constant 0 : index
    %22 = vector.load %arg9[%c8, %c0_16] : memref<36x256xf32, #tpu.memory_space<vmem>>, vector<4x256xf32>
    tpu.vector_store %arg9[%c8, %c0_16], %21 {strides = array<i32>} : memref<36x256xf32, #tpu.memory_space<vmem>>, vector<4x256xf32>,
    %23 = vector.extract_strided_slice %7 {offsets = [0, 127], sizes = [4, 256], strides = [1, 1]} : vector<4x512xf32> to vector<4x256xf32>
    %c3 = arith.constant 3 : index
    %c0_17 = arith.constant 0 : index
    %24 = vector.load %arg2[%c3, %c0_17] : memref<9x256xf32, #tpu.memory_space<vmem>>, vector<1x256xf32>
    %25 = vector.broadcast %24 : vector<1x256xf32> to vector<4x256xf32>
    %26 = arith.mulf %23, %25 : vector<4x256xf32>
    %c12 = arith.constant 12 : index
    %c0_18 = arith.constant 0 : index
    %27 = vector.load %arg9[%c12, %c0_18] : memref<36x256xf32, #tpu.memory_space<vmem>>, vector<4x256xf32>
    tpu.vector_store %arg9[%c12, %c0_18], %26 {strides = array<i32>} : memref<36x256xf32, #tpu.memory_space<vmem>>, vector<4x256xf32>,
    %28 = vector.extract_strided_slice %7 {offsets = [0, 128], sizes = [4, 256], strides = [1, 1]} : vector<4x512xf32> to vector<4x256xf32>
    %c16 = arith.constant 16 : index
    %c0_19 = arith.constant 0 : index
    %29 = vector.load %arg9[%c16, %c0_19] : memref<36x256xf32, #tpu.memory_space<vmem>>, vector<4x256xf32>
    tpu.vector_store %arg9[%c16, %c0_19], %28 {strides = array<i32>} : memref<36x256xf32, #tpu.memory_space<vmem>>, vector<4x256xf32>,
    %30 = vector.extract_strided_slice %7 {offsets = [0, 129], sizes = [4, 256], strides = [1, 1]} : vector<4x512xf32> to vector<4x256xf32>
    %c5 = arith.constant 5 : index
    %c0_20 = arith.constant 0 : index
    %31 = vector.load %arg2[%c5, %c0_20] : memref<9x256xf32, #tpu.memory_space<vmem>>, vector<1x256xf32>
    %32 = vector.broadcast %31 : vector<1x256xf32> to vector<4x256xf32>
    %33 = arith.mulf %30, %32 : vector<4x256xf32>
    %c20 = arith.constant 20 : index
    %c0_21 = arith.constant 0 : index
    %34 = vector.load %arg9[%c20, %c0_21] : memref<36x256xf32, #tpu.memory_space<vmem>>, vector<4x256xf32>
    tpu.vector_store %arg9[%c20, %c0_21], %33 {strides = array<i32>} : memref<36x256xf32, #tpu.memory_space<vmem>>, vector<4x256xf32>,
    %35 = vector.extract_strided_slice %7 {offsets = [0, 143], sizes = [4, 256], strides = [1, 1]} : vector<4x512xf32> to vector<4x256xf32>
    %c6 = arith.constant 6 : index
    %c0_22 = arith.constant 0 : index
    %36 = vector.load %arg2[%c6, %c0_22] : memref<9x256xf32, #tpu.memory_space<vmem>>, vector<1x256xf32>
    %37 = vector.broadcast %36 : vector<1x256xf32> to vector<4x256xf32>
    %38 = arith.mulf %35, %37 : vector<4x256xf32>
    %c24 = arith.constant 24 : index
    %c0_23 = arith.constant 0 : index
    %39 = vector.load %arg9[%c24, %c0_23] : memref<36x256xf32, #tpu.memory_space<vmem>>, vector<4x256xf32>
    tpu.vector_store %arg9[%c24, %c0_23], %38 {strides = array<i32>} : memref<36x256xf32, #tpu.memory_space<vmem>>, vector<4x256xf32>,
    %40 = vector.extract_strided_slice %7 {offsets = [0, 144], sizes = [4, 256], strides = [1, 1]} : vector<4x512xf32> to vector<4x256xf32>
    %c7 = arith.constant 7 : index
    %c0_24 = arith.constant 0 : index
    %41 = vector.load %arg2[%c7, %c0_24] : memref<9x256xf32, #tpu.memory_space<vmem>>, vector<1x256xf32>
    %42 = vector.broadcast %41 : vector<1x256xf32> to vector<4x256xf32>
    %43 = arith.mulf %40, %42 : vector<4x256xf32>
    %c28 = arith.constant 28 : index
    %c0_25 = arith.constant 0 : index
    %44 = vector.load %arg9[%c28, %c0_25] : memref<36x256xf32, #tpu.memory_space<vmem>>, vector<4x256xf32>
    tpu.vector_store %arg9[%c28, %c0_25], %43 {strides = array<i32>} : memref<36x256xf32, #tpu.memory_space<vmem>>, vector<4x256xf32>,
    %45 = vector.extract_strided_slice %7 {offsets = [0, 145], sizes = [4, 256], strides = [1, 1]} : vector<4x512xf32> to vector<4x256xf32>
    %c8_26 = arith.constant 8 : index
    %c0_27 = arith.constant 0 : index
    %46 = vector.load %arg2[%c8_26, %c0_27] : memref<9x256xf32, #tpu.memory_space<vmem>>, vector<1x256xf32>
    %47 = vector.broadcast %46 : vector<1x256xf32> to vector<4x256xf32>
    %48 = arith.mulf %45, %47 : vector<4x256xf32>
    %c32 = arith.constant 32 : index
    %c0_28 = arith.constant 0 : index
    %49 = vector.load %arg9[%c32, %c0_28] : memref<36x256xf32, #tpu.memory_space<vmem>>, vector<4x256xf32>
    tpu.vector_store %arg9[%c32, %c0_28], %48 {strides = array<i32>} : memref<36x256xf32, #tpu.memory_space<vmem>>, vector<4x256xf32>,
    %c0_29 = arith.constant 0 : index
    %c0_30 = arith.constant 0 : index
    %50 = vector.load %arg3[%c0_29, %c0_30] : memref<2x36xbf16, #tpu.memory_space<vmem>>, vector<2x36xbf16>
    %c0_31 = arith.constant 0 : index
    %c0_32 = arith.constant 0 : index
    %51 = vector.load %arg9[%c0_31, %c0_32] : memref<36x256xf32, #tpu.memory_space<vmem>>, vector<36x256xf32>
    %52 = arith.truncf %51 : vector<36x256xf32> to vector<36x256xbf16>
    %cst_33 = arith.constant dense<0.000000e+00> : vector<2x256xf32>
    %53 = tpu.matmul %50, %52, %cst_33 {dimension_numbers = #tpu.dot_dimension_numbers<[1], [0], [0], [1], [0, 0, 1, 1], [], []>} : vector<2x36xbf16>, vector<36x256xbf16>, vector<2x256xf32> -> vector<2x256xf32>
    %c0_34 = arith.constant 0 : index
    %c0_35 = arith.constant 0 : index
    %54 = vector.load %arg4[%c0_34, %c0_35] : memref<2x1xf32, #tpu.memory_space<vmem>>, vector<2x1xf32>
    %55 = vector.broadcast %54 : vector<2x1xf32> to vector<2x256xf32>
    %56 = arith.addf %53, %55 : vector<2x256xf32>
    %57 = arith.negf %56 : vector<2x256xf32>
    %58 = math.exp %57 : vector<2x256xf32>
    %cst_36 = arith.constant 1.000000e+00 : f32
    %59 = vector.broadcast %cst_36 : f32 to vector<2x256xf32>
    %60 = arith.addf %59, %58 : vector<2x256xf32>
    %61 = arith.divf %59, %60 : vector<2x256xf32>
    %62 = arith.mulf %56, %61 : vector<2x256xf32>
    %cst_37 = arith.constant 0.000000e+00 : f32
    %63 = vector.broadcast %cst_37 : f32 to vector<2x128xf32>
    %c0_38 = arith.constant 0 : index
    %c0_39 = arith.constant 0 : index
    %64 = vector.load %arg10[%c0_38, %c0_39] : memref<2x512xf32, #tpu.memory_space<vmem>>, vector<2x128xf32>
    tpu.vector_store %arg10[%c0_38, %c0_39], %63 {strides = array<i32>} : memref<2x512xf32, #tpu.memory_space<vmem>>, vector<2x128xf32>,
    %cst_40 = arith.constant 0.000000e+00 : f32
    %65 = vector.broadcast %cst_40 : f32 to vector<2x128xf32>
    %c0_41 = arith.constant 0 : index
    %c384_42 = arith.constant 384 : index
    %66 = vector.load %arg10[%c0_41, %c384_42] : memref<2x512xf32, #tpu.memory_space<vmem>>, vector<2x128xf32>
    tpu.vector_store %arg10[%c0_41, %c384_42], %65 {strides = array<i32>} : memref<2x512xf32, #tpu.memory_space<vmem>>, vector<2x128xf32>,
    %c0_43 = arith.constant 0 : index
    %c128_44 = arith.constant 128 : index
    %67 = vector.load %arg10[%c0_43, %c128_44] : memref<2x512xf32, #tpu.memory_space<vmem>>, vector<2x256xf32>
    tpu.vector_store %arg10[%c0_43, %c128_44], %62 {strides = array<i32>} : memref<2x512xf32, #tpu.memory_space<vmem>>, vector<2x256xf32>,
    %c0_45 = arith.constant 0 : index
    %c0_46 = arith.constant 0 : index
    %68 = vector.load %arg10[%c0_45, %c0_46] : memref<2x512xf32, #tpu.memory_space<vmem>>, vector<2x512xf32>
    %69 = vector.extract_strided_slice %68 {offsets = [0, 111], sizes = [2, 256], strides = [1, 1]} : vector<2x512xf32> to vector<2x256xf32>
    %c0_47 = arith.constant 0 : index
    %c0_48 = arith.constant 0 : index
    %70 = vector.load %arg2[%c0_47, %c0_48] : memref<9x256xf32, #tpu.memory_space<vmem>>, vector<1x256xf32>
    %71 = vector.broadcast %70 : vector<1x256xf32> to vector<2x256xf32>
    %72 = arith.mulf %69, %71 : vector<2x256xf32>
    %c0_49 = arith.constant 0 : index
    %c0_50 = arith.constant 0 : index
    %73 = vector.load %arg11[%c0_49, %c0_50] : memref<18x256xf32, #tpu.memory_space<vmem>>, vector<2x256xf32>
    tpu.vector_store %arg11[%c0_49, %c0_50], %72 {strides = array<i32>} : memref<18x256xf32, #tpu.memory_space<vmem>>, vector<2x256xf32>,
    %74 = vector.extract_strided_slice %68 {offsets = [0, 112], sizes = [2, 256], strides = [1, 1]} : vector<2x512xf32> to vector<2x256xf32>
    %c1_51 = arith.constant 1 : index
    %c0_52 = arith.constant 0 : index
    %75 = vector.load %arg2[%c1_51, %c0_52] : memref<9x256xf32, #tpu.memory_space<vmem>>, vector<1x256xf32>
    %76 = vector.broadcast %75 : vector<1x256xf32> to vector<2x256xf32>
    %77 = arith.mulf %74, %76 : vector<2x256xf32>
    %c2_53 = arith.constant 2 : index
    %c0_54 = arith.constant 0 : index
    %78 = vector.load %arg11[%c2_53, %c0_54] : memref<18x256xf32, #tpu.memory_space<vmem>>, vector<2x256xf32>
    tpu.vector_store %arg11[%c2_53, %c0_54], %77 {strides = array<i32>} : memref<18x256xf32, #tpu.memory_space<vmem>>, vector<2x256xf32>,
    %79 = vector.extract_strided_slice %68 {offsets = [0, 113], sizes = [2, 256], strides = [1, 1]} : vector<2x512xf32> to vector<2x256xf32>
    %c2_55 = arith.constant 2 : index
    %c0_56 = arith.constant 0 : index
    %80 = vector.load %arg2[%c2_55, %c0_56] : memref<9x256xf32, #tpu.memory_space<vmem>>, vector<1x256xf32>
    %81 = vector.broadcast %80 : vector<1x256xf32> to vector<2x256xf32>
    %82 = arith.mulf %79, %81 : vector<2x256xf32>
    %c4_57 = arith.constant 4 : index
    %c0_58 = arith.constant 0 : index
    %83 = vector.load %arg11[%c4_57, %c0_58] : memref<18x256xf32, #tpu.memory_space<vmem>>, vector<2x256xf32>
    tpu.vector_store %arg11[%c4_57, %c0_58], %82 {strides = array<i32>} : memref<18x256xf32, #tpu.memory_space<vmem>>, vector<2x256xf32>,
    %84 = vector.extract_strided_slice %68 {offsets = [0, 127], sizes = [2, 256], strides = [1, 1]} : vector<2x512xf32> to vector<2x256xf32>
    %c3_59 = arith.constant 3 : index
    %c0_60 = arith.constant 0 : index
    %85 = vector.load %arg2[%c3_59, %c0_60] : memref<9x256xf32, #tpu.memory_space<vmem>>, vector<1x256xf32>
    %86 = vector.broadcast %85 : vector<1x256xf32> to vector<2x256xf32>
    %87 = arith.mulf %84, %86 : vector<2x256xf32>
    %c6_61 = arith.constant 6 : index
    %c0_62 = arith.constant 0 : index
    %88 = vector.load %arg11[%c6_61, %c0_62] : memref<18x256xf32, #tpu.memory_space<vmem>>, vector<2x256xf32>
    tpu.vector_store %arg11[%c6_61, %c0_62], %87 {strides = array<i32>} : memref<18x256xf32, #tpu.memory_space<vmem>>, vector<2x256xf32>,
    %89 = vector.extract_strided_slice %68 {offsets = [0, 128], sizes = [2, 256], strides = [1, 1]} : vector<2x512xf32> to vector<2x256xf32>
    %c8_63 = arith.constant 8 : index
    %c0_64 = arith.constant 0 : index
    %90 = vector.load %arg11[%c8_63, %c0_64] : memref<18x256xf32, #tpu.memory_space<vmem>>, vector<2x256xf32>
    tpu.vector_store %arg11[%c8_63, %c0_64], %89 {strides = array<i32>} : memref<18x256xf32, #tpu.memory_space<vmem>>, vector<2x256xf32>,
    %91 = vector.extract_strided_slice %68 {offsets = [0, 129], sizes = [2, 256], strides = [1, 1]} : vector<2x512xf32> to vector<2x256xf32>
    %c5_65 = arith.constant 5 : index
    %c0_66 = arith.constant 0 : index
    %92 = vector.load %arg2[%c5_65, %c0_66] : memref<9x256xf32, #tpu.memory_space<vmem>>, vector<1x256xf32>
    %93 = vector.broadcast %92 : vector<1x256xf32> to vector<2x256xf32>
    %94 = arith.mulf %91, %93 : vector<2x256xf32>
    %c10 = arith.constant 10 : index
    %c0_67 = arith.constant 0 : index
    %95 = vector.load %arg11[%c10, %c0_67] : memref<18x256xf32, #tpu.memory_space<vmem>>, vector<2x256xf32>
    tpu.vector_store %arg11[%c10, %c0_67], %94 {strides = array<i32>} : memref<18x256xf32, #tpu.memory_space<vmem>>, vector<2x256xf32>,
    %96 = vector.extract_strided_slice %68 {offsets = [0, 143], sizes = [2, 256], strides = [1, 1]} : vector<2x512xf32> to vector<2x256xf32>
    %c6_68 = arith.constant 6 : index
    %c0_69 = arith.constant 0 : index
    %97 = vector.load %arg2[%c6_68, %c0_69] : memref<9x256xf32, #tpu.memory_space<vmem>>, vector<1x256xf32>
    %98 = vector.broadcast %97 : vector<1x256xf32> to vector<2x256xf32>
    %99 = arith.mulf %96, %98 : vector<2x256xf32>
    %c12_70 = arith.constant 12 : index
    %c0_71 = arith.constant 0 : index
    %100 = vector.load %arg11[%c12_70, %c0_71] : memref<18x256xf32, #tpu.memory_space<vmem>>, vector<2x256xf32>
    tpu.vector_store %arg11[%c12_70, %c0_71], %99 {strides = array<i32>} : memref<18x256xf32, #tpu.memory_space<vmem>>, vector<2x256xf32>,
    %101 = vector.extract_strided_slice %68 {offsets = [0, 144], sizes = [2, 256], strides = [1, 1]} : vector<2x512xf32> to vector<2x256xf32>
    %c7_72 = arith.constant 7 : index
    %c0_73 = arith.constant 0 : index
    %102 = vector.load %arg2[%c7_72, %c0_73] : memref<9x256xf32, #tpu.memory_space<vmem>>, vector<1x256xf32>
    %103 = vector.broadcast %102 : vector<1x256xf32> to vector<2x256xf32>
    %104 = arith.mulf %101, %103 : vector<2x256xf32>
    %c14 = arith.constant 14 : index
    %c0_74 = arith.constant 0 : index
    %105 = vector.load %arg11[%c14, %c0_74] : memref<18x256xf32, #tpu.memory_space<vmem>>, vector<2x256xf32>
    tpu.vector_store %arg11[%c14, %c0_74], %104 {strides = array<i32>} : memref<18x256xf32, #tpu.memory_space<vmem>>, vector<2x256xf32>,
    %106 = vector.extract_strided_slice %68 {offsets = [0, 145], sizes = [2, 256], strides = [1, 1]} : vector<2x512xf32> to vector<2x256xf32>
    %c8_75 = arith.constant 8 : index
    %c0_76 = arith.constant 0 : index
    %107 = vector.load %arg2[%c8_75, %c0_76] : memref<9x256xf32, #tpu.memory_space<vmem>>, vector<1x256xf32>
    %108 = vector.broadcast %107 : vector<1x256xf32> to vector<2x256xf32>
    %109 = arith.mulf %106, %108 : vector<2x256xf32>
    %c16_77 = arith.constant 16 : index
    %c0_78 = arith.constant 0 : index
    %110 = vector.load %arg11[%c16_77, %c0_78] : memref<18x256xf32, #tpu.memory_space<vmem>>, vector<2x256xf32>
    tpu.vector_store %arg11[%c16_77, %c0_78], %109 {strides = array<i32>} : memref<18x256xf32, #tpu.memory_space<vmem>>, vector<2x256xf32>,
    %c0_79 = arith.constant 0 : index
    %c0_80 = arith.constant 0 : index
    %111 = vector.load %arg5[%c0_79, %c0_80] : memref<4x18xbf16, #tpu.memory_space<vmem>>, vector<4x18xbf16>
    %c0_81 = arith.constant 0 : index
    %c0_82 = arith.constant 0 : index
    %112 = vector.load %arg11[%c0_81, %c0_82] : memref<18x256xf32, #tpu.memory_space<vmem>>, vector<18x256xf32>
    %113 = arith.truncf %112 : vector<18x256xf32> to vector<18x256xbf16>
    %cst_83 = arith.constant dense<0.000000e+00> : vector<4x256xf32>
    %114 = tpu.matmul %111, %113, %cst_83 {dimension_numbers = #tpu.dot_dimension_numbers<[1], [0], [0], [1], [0, 0, 1, 1], [], []>} : vector<4x18xbf16>, vector<18x256xbf16>, vector<4x256xf32> -> vector<4x256xf32>
    %c0_84 = arith.constant 0 : index
    %c0_85 = arith.constant 0 : index
    %115 = vector.load %arg6[%c0_84, %c0_85] : memref<4x1xf32, #tpu.memory_space<vmem>>, vector<4x1xf32>
    %116 = vector.broadcast %115 : vector<4x1xf32> to vector<4x256xf32>
    %117 = arith.addf %114, %116 : vector<4x256xf32>
    %118 = arith.negf %117 : vector<4x256xf32>
    %119 = math.exp %118 : vector<4x256xf32>
    %cst_86 = arith.constant 1.000000e+00 : f32
    %120 = vector.broadcast %cst_86 : f32 to vector<4x256xf32>
    %121 = arith.addf %120, %119 : vector<4x256xf32>
    %122 = arith.divf %120, %121 : vector<4x256xf32>
    %123 = arith.mulf %117, %122 : vector<4x256xf32>
    %124 = arith.addf %123, %1 : vector<4x256xf32>
    %c0_87 = arith.constant 0 : index
    %c0_88 = arith.constant 0 : index
    %c0_89 = arith.constant 0 : index
    %125 = vector.load %arg7[%c0_87, %c0_88, %c0_89] : memref<1x4x256xf32, #tpu.memory_space<vmem>>, vector<1x4x256xf32>
    %126 = vector.shape_cast %125 : vector<1x4x256xf32> to vector<4x256xf32>
    %127 = vector.shape_cast %124 : vector<4x256xf32> to vector<1x4x256xf32>
    tpu.vector_store %arg7[%c0_87, %c0_88, %c0_89], %127 {strides = array<i32>} : memref<1x4x256xf32, #tpu.memory_space<vmem>>, vector<1x4x256xf32>,
    return
  }
  func.func @transform_0(%arg0: i32) -> (i32, i32, i32) {
    %c0_i32 = arith.constant 0 : i32
    %c0_i32_0 = arith.constant 0 : i32
    %c0_i32_1 = arith.constant 0 : i32
    return %arg0, %c0_i32, %c0_i32_0 : i32, i32, i32
  }
  func.func @transform_1(%arg0: i32) -> (i32, i32) {
    %c0_i32 = arith.constant 0 : i32
    %c0_i32_0 = arith.constant 0 : i32
    %c0_i32_1 = arith.constant 0 : i32
    return %c0_i32, %c0_i32_0 : i32, i32
  }
  func.func @transform_2(%arg0: i32) -> (i32, i32) {
    %c0_i32 = arith.constant 0 : i32
    %c0_i32_0 = arith.constant 0 : i32
    %c0_i32_1 = arith.constant 0 : i32
    return %c0_i32, %c0_i32_0 : i32, i32
  }
  func.func @transform_3(%arg0: i32) -> (i32, i32) {
    %c0_i32 = arith.constant 0 : i32
    %c0_i32_0 = arith.constant 0 : i32
    %c0_i32_1 = arith.constant 0 : i32
    return %c0_i32, %c0_i32_0 : i32, i32
  }
  func.func @transform_4(%arg0: i32) -> (i32, i32) {
    %c0_i32 = arith.constant 0 : i32
    %c0_i32_0 = arith.constant 0 : i32
    %c0_i32_1 = arith.constant 0 : i32
    return %c0_i32, %c0_i32_0 : i32, i32
  }
  func.func @transform_5(%arg0: i32) -> (i32, i32) {
    %c0_i32 = arith.constant 0 : i32
    %c0_i32_0 = arith.constant 0 : i32
    %c0_i32_1 = arith.constant 0 : i32
    return %c0_i32, %c0_i32_0 : i32, i32
  }
  func.func @transform_6(%arg0: i32) -> (i32, i32, i32) {
    %c0_i32 = arith.constant 0 : i32
    %c0_i32_0 = arith.constant 0 : i32
    %c0_i32_1 = arith.constant 0 : i32
    return %arg0, %c0_i32, %c0_i32_0 : i32, i32, i32
  }
}

</mosaic_0001>

<llo_original>
// kernel: _lambda_.1
$region0: #{_lambda_.1}
  #allocation0 [shape = 'u32[]', space=smem, size = 0x4, offset = 0x4, fixed_abs, tag = 'smem constant byte address 0x4 - core index']
  #allocation1 [shape = 'u32[144,128]{1,0:T(1,128)}', space=vmem, size = 0x12000, scoped, tag = 'internal scratch']
  #allocation2 [shape = 'f32[4,512]{1,0:T(4,128)}', space=vmem, size = 0x2000, scoped, tag = 'scratch operand']
  #allocation3 [shape = 'f32[36,256]{1,0:T(8,128)}', space=vmem, size = 0xa000, scoped, tag = 'scratch operand']
  #allocation4 [shape = 'f32[2,512]{1,0:T(2,128)}', space=vmem, size = 0x1000, scoped, tag = 'scratch operand']
  #allocation5 [shape = 'f32[18,256]{1,0:T(8,128)}', space=vmem, size = 0x6000, scoped, tag = 'scratch operand']
  %s0 = inlined_call_operand.vmem [shape: f32[2,4,256], index: 0, kind: input, shape index: {}]
  %s1 = inlined_call_operand.vmem [shape: f32[9,256], index: 1, kind: input, shape index: {}]
  %s2 = inlined_call_operand.vmem [shape: bf16[2,36], index: 2, kind: input, shape index: {}]
  %s3 = inlined_call_operand.vmem [shape: f32[2,1], index: 3, kind: input, shape index: {}]
  %s4 = inlined_call_operand.vmem [shape: bf16[4,18], index: 4, kind: input, shape index: {}]
  %s5 = inlined_call_operand.vmem [shape: f32[4,1], index: 5, kind: input, shape index: {}]
  %s6 = inlined_call_operand.vmem [shape: f32[2,4,256], index: 6, kind: output, shape index: {}]
  %s7 = sld [smem:[#allocation0]]
  $region57: #{_lambda_.1} parent=0
    _
  %s9 = ssub.s32 1, %s7
  %s10 = scalar_select 0, %s9, %s7
  loop: start=0, step=1, limit=4
  $region2: #{_lambda_.1} parent=0 // loop_pre_header
    _
  $region3: #{_lambda_.1} parent=0 // loop_header
    %s12 = sphi 0, %s16
    %p13 = scmp.ge.s32.totalorder %s12, 4
    %s22 = sphi 0, %s24
    %s25 = sphi 0, %s22
    %s26 = sphi 0, %s25
    %s42 = sphi 0, %s26
    %s46 = sphi 0, %s46
    %s48 = sphi 0, %s46
    %s49 = sphi 0, %s48
    %s63 = sphi 0, %s49
    %s67 = sphi 0, %s67
    %s69 = sphi 0, %s67
    %s70 = sphi 0, %s69
    %s84 = sphi 0, %s70
    %s88 = sphi 0, %s88
    %s90 = sphi 0, %s88
    %s91 = sphi 0, %s90
    %s105 = sphi 0, %s91
    %s109 = sphi 0, %s109
    %s111 = sphi 0, %s109
    %s112 = sphi 0, %s111
    %s126 = sphi 0, %s112
    %s130 = sphi 0, %s130
    %s132 = sphi 0, %s130
    %s133 = sphi 0, %s132
    %s147 = sphi 0, %s133
    %s153 = sphi 0, %s155
    %s156 = sphi 0, %s153
    %s157 = sphi 0, %s156
    %s173 = sphi 0, %s157
  $region4: #{_lambda_.1} parent=0 // loop_header_branch
    %15 = sbr.rel (%p13) target = $region8
  $region5: #{_lambda_.1} parent=0 // loop_body
    %s17 = ssub.s32 %s12, 1
    %s18 = ssub.s32 %s12, 2
    %s19 = sadd.s32 %s12, 1
    %s20 = ssub.s32 %s12, %s19
    %p21 = scmp.eq.s32.totalorder %s20, 0
    %s23 = sadd.s32 %s22, 1
    %s24 = scalar_select %p21, %s22, %s23
    %p27 = pneg %p21
    %p28 = scmp.eq.s32.totalorder %s12, 1
    %p29 = por %p27, %p28
    %p30 = scmp.ne.s32.totalorder %s22, %s25
    %p31 = scmp.eq.s32.totalorder %s12, 0
    %p32 = por %p30, %p31
    %p33 = scmp.ne.s32.totalorder %s22, %s25
    %p34 = scmp.eq.s32.totalorder %s17, 1
    %p35 = por %p33, %p34
    %p36 = scmp.ne.s32.totalorder %s25, %s26
    %p37 = scmp.eq.s32.totalorder %s17, 0
    %p38 = por %p36, %p37
    %p39 = scmp.ne.s32.totalorder %s25, %s26
    %p40 = scmp.eq.s32.totalorder %s18, 1
    %p41 = por %p39, %p40
    %p43 = scmp.ne.s32.totalorder %s26, %s42
    %p44 = scmp.eq.s32.totalorder %s18, 0
    %p45 = por %p43, %p44
    %s47 = sadd.s32 %s46, 1
    %p50 = scmp.eq.s32.totalorder %s12, 1
    %p51 = scmp.ne.s32.totalorder %s46, %s48
    %p52 = scmp.eq.s32.totalorder %s12, 0
    %p53 = por %p51, %p52
    %p54 = scmp.ne.s32.totalorder %s46, %s48
    %p55 = scmp.eq.s32.totalorder %s17, 1
    %p56 = por %p54, %p55
    %p57 = scmp.ne.s32.totalorder %s48, %s49
    %p58 = scmp.eq.s32.totalorder %s17, 0
    %p59 = por %p57, %p58
    %p60 = scmp.ne.s32.totalorder %s48, %s49
    %p61 = scmp.eq.s32.totalorder %s18, 1
    %p62 = por %p60, %p61
    %p64 = scmp.ne.s32.totalorder %s49, %s63
    %p65 = scmp.eq.s32.totalorder %s18, 0
    %p66 = por %p64, %p65
    %s68 = sadd.s32 %s67, 1
    %p71 = scmp.eq.s32.totalorder %s12, 1
    %p72 = scmp.ne.s32.totalorder %s67, %s69
    %p73 = scmp.eq.s32.totalorder %s12, 0
    %p74 = por %p72, %p73
    %p75 = scmp.ne.s32.totalorder %s67, %s69
    %p76 = scmp.eq.s32.totalorder %s17, 1
    %p77 = por %p75, %p76
    %p78 = scmp.ne.s32.totalorder %s69, %s70
    %p79 = scmp.eq.s32.totalorder %s17, 0
    %p80 = por %p78, %p79
    %p81 = scmp.ne.s32.totalorder %s69, %s70
    %p82 = scmp.eq.s32.totalorder %s18, 1
    %p83 = por %p81, %p82
    %p85 = scmp.ne.s32.totalorder %s70, %s84
    %p86 = scmp.eq.s32.totalorder %s18, 0
    %p87 = por %p85, %p86
    %s89 = sadd.s32 %s88, 1
    %p92 = scmp.eq.s32.totalorder %s12, 1
    %p93 = scmp.ne.s32.totalorder %s88, %s90
    %p94 = scmp.eq.s32.totalorder %s12, 0
    %p95 = por %p93, %p94
    %p96 = scmp.ne.s32.totalorder %s88, %s90
    %p97 = scmp.eq.s32.totalorder %s17, 1
    %p98 = por %p96, %p97
    %p99 = scmp.ne.s32.totalorder %s90, %s91
    %p100 = scmp.eq.s32.totalorder %s17, 0
    %p101 = por %p99, %p100
    %p102 = scmp.ne.s32.totalorder %s90, %s91
    %p103 = scmp.eq.s32.totalorder %s18, 1
    %p104 = por %p102, %p103
    %p106 = scmp.ne.s32.totalorder %s91, %s105
    %p107 = scmp.eq.s32.totalorder %s18, 0
    %p108 = por %p106, %p107
    %s110 = sadd.s32 %s109, 1
    %p113 = scmp.eq.s32.totalorder %s12, 1
    %p114 = scmp.ne.s32.totalorder %s109, %s111
    %p115 = scmp.eq.s32.totalorder %s12, 0
    %p116 = por %p114, %p115
    %p117 = scmp.ne.s32.totalorder %s109, %s111
    %p118 = scmp.eq.s32.totalorder %s17, 1
    %p119 = por %p117, %p118
    %p120 = scmp.ne.s32.totalorder %s111, %s112
    %p121 = scmp.eq.s32.totalorder %s17, 0
    %p122 = por %p120, %p121
    %p123 = scmp.ne.s32.totalorder %s111, %s112
    %p124 = scmp.eq.s32.totalorder %s18, 1
    %p125 = por %p123, %p124
    %p127 = scmp.ne.s32.totalorder %s112, %s126
    %p128 = scmp.eq.s32.totalorder %s18, 0
    %p129 = por %p127, %p128
    %s131 = sadd.s32 %s130, 1
    %p134 = scmp.eq.s32.totalorder %s12, 1
    %p135 = scmp.ne.s32.totalorder %s130, %s132
    %p136 = scmp.eq.s32.totalorder %s12, 0
    %p137 = por %p135, %p136
    %p138 = scmp.ne.s32.totalorder %s130, %s132
    %p139 = scmp.eq.s32.totalorder %s17, 1
    %p140 = por %p138, %p139
    %p141 = scmp.ne.s32.totalorder %s132, %s133
    %p142 = scmp.eq.s32.totalorder %s17, 0
    %p143 = por %p141, %p142
    %p144 = scmp.ne.s32.totalorder %s132, %s133
    %p145 = scmp.eq.s32.totalorder %s18, 1
    %p146 = por %p144, %p145
    %p148 = scmp.ne.s32.totalorder %s133, %s147
    %p149 = scmp.eq.s32.totalorder %s18, 0
    %p150 = por %p148, %p149
    %s151 = ssub.s32 %s12, %s19
    %p152 = scmp.eq.s32.totalorder %s151, 0
    %s154 = sadd.s32 %s153, 1
    %s155 = scalar_select %p152, %s153, %s154
    %p158 = pneg %p152
    %p159 = scmp.eq.s32.totalorder %s12, 1
    %p160 = por %p158, %p159
    %p161 = scmp.ne.s32.totalorder %s153, %s156
    %p162 = scmp.eq.s32.totalorder %s12, 0
    %p163 = por %p161, %p162
    %p164 = scmp.ne.s32.totalorder %s153, %s156
    %p165 = scmp.eq.s32.totalorder %s17, 1
    %p166 = por %p164, %p165
    %p167 = scmp.ne.s32.totalorder %s156, %s157
    %p168 = scmp.eq.s32.totalorder %s17, 0
    %p169 = por %p167, %p168
    %p170 = scmp.ne.s32.totalorder %s156, %s157
    %p171 = scmp.eq.s32.totalorder %s18, 1
    %p172 = por %p170, %p171
    %p174 = scmp.ne.s32.totalorder %s157, %s173
    %p175 = scmp.eq.s32.totalorder %s18, 0
    %p176 = por %p174, %p175
    %p177 = scmp.le.s32.totalorder 1, %s12
    %p178 = scmp.lt.s32.totalorder %s12, 3
    %p179 = pnand %p177, %p178
    %p180 = pneg %p179
    // Predicated region
    $region9: #{_lambda_.1} parent=5 // pred_check
      _
    $region10: #{_lambda_.1} parent=5 // pred_check_branch
      %182 = sbr.rel (%p179) target = $region12
    $region11: #{_lambda_.1} parent=5 // pred_region
      %s183 = ssub.s32 %s12, 1
      // Predicated region
      $region13: #{_lambda_.1} parent=11 // pred_check
        %p184 = pneg %p59
      $region14: #{_lambda_.1} parent=11 // pred_check_branch
        %186 = sbr.rel (%p184) target = $region16
      $region15: #{_lambda_.1} parent=11 // pred_region
        _
      $region16: #{_lambda_.1} parent=11 // pred_fallthru
        _
      // Predicated region
      $region17: #{_lambda_.1} parent=11 // pred_check
        %p187 = pneg %p80
      $region18: #{_lambda_.1} parent=11 // pred_check_branch
        %189 = sbr.rel (%p187) target = $region20
      $region19: #{_lambda_.1} parent=11 // pred_region
        _
      $region20: #{_lambda_.1} parent=11 // pred_fallthru
        _
      // Predicated region
      $region21: #{_lambda_.1} parent=11 // pred_check
        %p190 = pneg %p101
      $region22: #{_lambda_.1} parent=11 // pred_check_branch
        %192 = sbr.rel (%p190) target = $region24
      $region23: #{_lambda_.1} parent=11 // pred_region
        _
      $region24: #{_lambda_.1} parent=11 // pred_fallthru
        _
      // Predicated region
      $region25: #{_lambda_.1} parent=11 // pred_check
        %p193 = pneg %p122
      $region26: #{_lambda_.1} parent=11 // pred_check_branch
        %195 = sbr.rel (%p193) target = $region28
      $region27: #{_lambda_.1} parent=11 // pred_region
        _
      $region28: #{_lambda_.1} parent=11 // pred_fallthru
        _
      // Predicated region
      $region29: #{_lambda_.1} parent=11 // pred_check
        %p196 = pneg %p143
      $region30: #{_lambda_.1} parent=11 // pred_check_branch
        %198 = sbr.rel (%p196) target = $region32
      $region31: #{_lambda_.1} parent=11 // pred_region
        _
      $region32: #{_lambda_.1} parent=11 // pred_fallthru
        _
    $region12: #{_lambda_.1} parent=5 // pred_fallthru
      _
    %p199 = scmp.lt.s32.totalorder %s12, 2
    // Predicated region
    $region33: #{_lambda_.1} parent=5 // pred_check
      %p200 = pneg %p199
    $region34: #{_lambda_.1} parent=5 // pred_check_branch
      %202 = sbr.rel (%p200) target = $region36
    $region35: #{_lambda_.1} parent=5 // pred_region
      // Predicated region
      $region37: #{_lambda_.1} parent=35 // pred_check
        %p203 = pneg %p32
      $region38: #{_lambda_.1} parent=35 // pred_check_branch
        %205 = sbr.rel (%p203) target = $region40
      $region39: #{_lambda_.1} parent=35 // pred_region
        %p206 = scmp.lt.s32.totalorder %s12, 1
        %s207 = scalar_select %p206, %s12, 1
        %s208 = smul.addr %s207, 2
        %s209 = smul.addr %s208, 4
        %s210 = scalar_lea.vmem %s0, %s209
      $region40: #{_lambda_.1} parent=35 // pred_fallthru
        _
    $region36: #{_lambda_.1} parent=5 // pred_fallthru
      _
    %p211 = scmp.le.s32.totalorder 1, %s12
    %p212 = scmp.lt.s32.totalorder %s12, 3
    %p213 = pnand %p211, %p212
    %p214 = pneg %p213
    // Predicated region
    $region41: #{_lambda_.1} parent=5 // pred_check
      _
    $region42: #{_lambda_.1} parent=5 // pred_check_branch
      %216 = sbr.rel (%p213) target = $region44
    $region43: #{_lambda_.1} parent=5 // pred_region
      %s217 = ssub.s32 %s12, 1
      %p218 = scmp.lt.s32.totalorder %s17, 1
      %s219 = scalar_select %p218, %s17, 1
      %s220 = smul.addr %s219, 2
      %s221 = smul.addr %s220, 4
      %s222 = scalar_lea.vmem %s0, %s221
      %p223 = pneg %p38
      %p224 = pneg %p35
      %p225 = pneg %p59
      %p226 = pneg %p56
      %p227 = pneg %p80
      %p228 = pneg %p77
      %p229 = pneg %p101
      %p230 = pneg %p98
      %p231 = pneg %p122
      %p232 = pneg %p119
      %p233 = pneg %p143
      %p234 = pneg %p140
      %p235 = pneg %p169
      %p236 = pneg %p166
      %p237 = scmp.lt.s32.totalorder %s17, 1
      %s238 = scalar_select %p237, %s17, 1
      %s239 = smul.addr %s238, 2
      %s240 = smul.addr %s239, 4
      %s241 = scalar_lea.vmem %s6, %s240
      %p242 = scmp.lt.s32.totalorder %s17, 1
      %s243 = scalar_select %p242, %s17, 1
      %s244 = smul.addr %s243, 2
      %s245 = smul.addr %s244, 4
      %s246 = scalar_lea.vmem %s0, %s245
      %p247 = scmp.lt.s32.totalorder %s17, 1
      %s248 = scalar_select %p247, %s17, 1
      %s249 = smul.addr %s248, 2
      %s250 = smul.addr %s249, 4
      %s251 = scalar_lea.vmem %s6, %s250
      %v253 = vld [vmem:[%s246] sm:$0xff]
      %254 = vst [vmem:[#allocation2] sm:$0xf] 0.0
      %255 = vst [vmem:[#allocation2 + $0xc] sm:$0xf] 0.0
      %256 = vst [vmem:[#allocation2 + $0x4] sm:$0xff] %v253
      %v257 = vld [vmem:[#allocation2] sm:$0xff]
      %v258 = vld [vmem:[#allocation2 + $0x8] sm:$0xff]
      %v259 = vld [vmem:[%s1] ss:$8 sm:$0x3]
      %v261 = vlaneseq
      %v262 = vshrl.u32 %v261, 7
      %v263 = vsub.s32 0, %v262
      %v264 = vrot.slane %v259, %v263
      %v265 = vlaneseq
      %v266 = vshrl.u32 %v265, 7
      %v267 = vsub.s32 1, %v266
      %v268 = vrot.slane %v259, %v267
      %v269 = vcombine.low %v264, %v268
      %270 = vrot.lane.b32.xlu0 %v269, 111
      %v271 = vpop.permute.xlu0 %270
      %v272 = vrot.slane %v271, 4
      %vm273 = vcmask 908288
      %v274 = vsel %vm273, %v272, %v271
      %v277 = vmul.f32 %v257, %v274
      %v278 = vmul.f32 %v258, %v272
      %v281 = vcombine.high %v277, %v277
      %282 = vrot.lane.b32.xlu0 %v277, 17
      %v283 = vpop.permute.xlu0 %282
      %284 = vrot.lane.b32.xlu0 %v281, 17
      %v285 = vpop.permute.xlu0 %284
      %286 = vrot.lane.b32.xlu0 %v278, 17
      %v287 = vpop.permute.xlu0 %286
      %vm288 = vcmask 138240
      %v289 = vsel %vm288, %v283, %v285
      %v290 = vsel %vm288, %v285, %v287
      %293 = vst [vmem:[#allocation3] sm:$0xf] %v289
      %294 = vst [vmem:[#allocation3 + $0x8] sm:$0xf] %v290
      %s295 = scalar_lea.vmem %s1, 1
      %v296 = vld [vmem:[%s295] ss:$8 sm:$0x3]
      %v298 = vlaneseq
      %v299 = vshrl.u32 %v298, 7
      %v300 = vsub.s32 0, %v299
      %v301 = vrot.slane %v296, %v300
      %v302 = vlaneseq
      %v303 = vshrl.u32 %v302, 7
      %v304 = vsub.s32 1, %v303
      %v305 = vrot.slane %v296, %v304
      %v306 = vcombine.low %v301, %v305
      %307 = vrot.lane.b32.xlu0 %v306, 112
      %v308 = vpop.permute.xlu0 %307
      %v309 = vrot.slane %v308, 4
      %vm310 = vcmask 916480
      %v311 = vsel %vm310, %v309, %v308
      %v314 = vmul.f32 %v257, %v311
      %v315 = vmul.f32 %v258, %v309
      %v318 = vcombine.low %v314, %v314
      %v319 = vcombine.low %v315, %v315
      %320 = vrot.lane.b32.xlu0 %v318, 16
      %v321 = vpop.permute.xlu0 %320
      %322 = vrot.lane.b32.xlu0 %v314, 16
      %v323 = vpop.permute.xlu0 %322
      %324 = vrot.lane.b32.xlu0 %v319, 16
      %v325 = vpop.permute.xlu0 %324
      %vm326 = vcmask 130048
      %v327 = vsel %vm326, %v321, %v323
      %v328 = vsel %vm326, %v323, %v325
      %331 = vst [vmem:[#allocation3] sm:$0xf0] %v327
      %332 = vst [vmem:[#allocation3 + $0x8] sm:$0xf0] %v328
      %s333 = scalar_lea.vmem %s1, 2
      %v334 = vld [vmem:[%s333] ss:$8 sm:$0x3]
      %v336 = vlaneseq
      %v337 = vshrl.u32 %v336, 7
      %v338 = vsub.s32 0, %v337
      %v339 = vrot.slane %v334, %v338
      %v340 = vlaneseq
      %v341 = vshrl.u32 %v340, 7
      %v342 = vsub.s32 1, %v341
      %v343 = vrot.slane %v334, %v342
      %v344 = vcombine.low %v339, %v343
      %345 = vrot.lane.b32.xlu0 %v344, 113
      %v346 = vpop.permute.xlu0 %345
      %v347 = vrot.slane %v346, 4
      %vm348 = vcmask 924672
      %v349 = vsel %vm348, %v347, %v346
      %v352 = vmul.f32 %v257, %v349
      %v353 = vmul.f32 %v258, %v347
      %v356 = vcombine.high %v352, %v352
      %357 = vrot.lane.b32.xlu0 %v352, 15
      %v358 = vpop.permute.xlu0 %357
      %359 = vrot.lane.b32.xlu0 %v356, 15
      %v360 = vpop.permute.xlu0 %359
      %361 = vrot.lane.b32.xlu0 %v353, 15
      %v362 = vpop.permute.xlu0 %361
      %vm363 = vcmask 121856
      %v364 = vsel %vm363, %v358, %v360
      %v365 = vsel %vm363, %v360, %v362
      %368 = vst [vmem:[#allocation3 + $0x10] sm:$0xf] %v364
      %369 = vst [vmem:[#allocation3 + $0x18] sm:$0xf] %v365
      %s370 = scalar_lea.vmem %s1, 3
      %v371 = vld [vmem:[%s370] ss:$8 sm:$0x3]
      %v373 = vlaneseq
      %v374 = vshrl.u32 %v373, 7
      %v375 = vsub.s32 0, %v374
      %v376 = vrot.slane %v371, %v375
      %v377 = vlaneseq
      %v378 = vshrl.u32 %v377, 7
      %v379 = vsub.s32 1, %v378
      %v380 = vrot.slane %v371, %v379
      %v381 = vcombine.low %v376, %v380
      %382 = vrot.lane.b32.xlu0 %v381, 127
      %v383 = vpop.permute.xlu0 %382
      %v384 = vrot.slane %v383, 4
      %vm385 = vcmask 1039360
      %v386 = vsel %vm385, %v384, %v383
      %v389 = vmul.f32 %v257, %v386
      %v390 = vmul.f32 %v258, %v384
      %v393 = vcombine.low %v389, %v389
      %v394 = vcombine.low %v390, %v390
      %395 = vrot.lane.b32.xlu0 %v393, 1
      %v396 = vpop.permute.xlu0 %395
      %397 = vrot.lane.b32.xlu0 %v389, 1
      %v398 = vpop.permute.xlu0 %397
      %399 = vrot.lane.b32.xlu0 %v394, 1
      %v400 = vpop.permute.xlu0 %399
      %vm401 = vcmask 7168
      %v402 = vsel %vm401, %v396, %v398
      %v403 = vsel %vm401, %v398, %v400
      %406 = vst [vmem:[#allocation3 + $0x10] sm:$0xf0] %v402
      %407 = vst [vmem:[#allocation3 + $0x18] sm:$0xf0] %v403
      %v410 = vcombine.high %v257, %v257
      %412 = vst [vmem:[#allocation3 + $0x20] sm:$0xf] %v410
      %413 = vst [vmem:[#allocation3 + $0x28] sm:$0xf] %v258
      %s414 = scalar_lea.vmem %s1, 5
      %v415 = vld [vmem:[%s414] ss:$8 sm:$0x3]
      %v417 = vlaneseq
      %v418 = vshrl.u32 %v417, 7
      %v419 = vsub.s32 0, %v418
      %v420 = vrot.slane %v415, %v419
      %v421 = vlaneseq
      %v422 = vshrl.u32 %v421, 7
      %v423 = vsub.s32 1, %v422
      %v424 = vrot.slane %v415, %v423
      %425 = vrot.lane.b32.xlu0 %v257, 127
      %v426 = vpop.permute.xlu0 %425
      %427 = vrot.lane.b32.xlu0 %v258, 127
      %v428 = vpop.permute.xlu0 %427
      %v429 = vrot.slane %v426, 4
      %v430 = vrot.slane %v428, 4
      %vm431 = vcmask 1043456
      %v432 = vsel %vm431, %v429, %v430
      %v433 = vsel %vm385, %v432, %v428
      %v435 = vcombine.low %v420, %v424
      %v437 = vmul.f32 %v433, %v435
      %v439 = vcombine.low %v437, %v437
      %441 = vst [vmem:[#allocation3 + $0x20] sm:$0xf0] %v439
      %442 = vst [vmem:[#allocation3 + $0x28] sm:$0xf0] %v437
      %s443 = scalar_lea.vmem %s1, 6
      %v444 = vld [vmem:[%s443] ss:$8 sm:$0x3]
      %v446 = vlaneseq
      %v447 = vshrl.u32 %v446, 7
      %v448 = vsub.s32 0, %v447
      %v449 = vrot.slane %v444, %v448
      %v450 = vlaneseq
      %v451 = vshrl.u32 %v450, 7
      %v452 = vsub.s32 1, %v451
      %v453 = vrot.slane %v444, %v452
      %454 = vrot.lane.b32.xlu0 %v257, 113
      %v455 = vpop.permute.xlu0 %454
      %456 = vrot.lane.b32.xlu0 %v258, 113
      %v457 = vpop.permute.xlu0 %456
      %v458 = vrot.slane %v455, 4
      %v459 = vrot.slane %v457, 4
      %v460 = vsel %vm431, %v458, %v459
      %v461 = vsel %vm348, %v460, %v457
      %v463 = vcombine.low %v449, %v453
      %v465 = vmul.f32 %v461, %v463
      %v467 = vcombine.high %v465, %v465
      %469 = vst [vmem:[#allocation3 + $0x30] sm:$0xf] %v465
      %470 = vst [vmem:[#allocation3 + $0x38] sm:$0xf] %v467
      %s471 = scalar_lea.vmem %s1, 7
      %v472 = vld [vmem:[%s471] ss:$8 sm:$0x3]
      %v474 = vlaneseq
      %v475 = vshrl.u32 %v474, 7
      %v476 = vsub.s32 0, %v475
      %v477 = vrot.slane %v472, %v476
      %v478 = vlaneseq
      %v479 = vshrl.u32 %v478, 7
      %v480 = vsub.s32 1, %v479
      %v481 = vrot.slane %v472, %v480
      %482 = vrot.lane.b32.xlu0 %v257, 112
      %v483 = vpop.permute.xlu0 %482
      %484 = vrot.lane.b32.xlu0 %v258, 112
      %v485 = vpop.permute.xlu0 %484
      %v486 = vrot.slane %v483, 4
      %v487 = vrot.slane %v485, 4
      %v488 = vsel %vm431, %v486, %v487
      %v489 = vsel %vm310, %v488, %v485
      %v491 = vcombine.low %v477, %v481
      %v493 = vmul.f32 %v489, %v491
      %v495 = vcombine.low %v493, %v493
      %497 = vst [vmem:[#allocation3 + $0x30] sm:$0xf0] %v495
      %498 = vst [vmem:[#allocation3 + $0x38] sm:$0xf0] %v493
      %s499 = scalar_lea.vmem %s1, 16
      %v500 = vld [vmem:[%s499] ss:$8 sm:$0x3]
      %v502 = vlaneseq
      %v503 = vshrl.u32 %v502, 7
      %v504 = vsub.s32 0, %v503
      %v505 = vrot.slane %v500, %v504
      %v506 = vlaneseq
      %v507 = vshrl.u32 %v506, 7
      %v508 = vsub.s32 1, %v507
      %v509 = vrot.slane %v500, %v508
      %510 = vrot.lane.b32.xlu0 %v257, 111
      %v511 = vpop.permute.xlu0 %510
      %512 = vrot.lane.b32.xlu0 %v258, 111
      %v513 = vpop.permute.xlu0 %512
      %v514 = vrot.slane %v511, 4
      %v515 = vrot.slane %v513, 4
      %v516 = vsel %vm431, %v514, %v515
      %v517 = vsel %vm273, %v516, %v513
      %v519 = vcombine.low %v505, %v509
      %v521 = vmul.f32 %v517, %v519
      %v523 = vcombine.high %v521, %v521
      %525 = vst [vmem:[#allocation3 + $0x40] sm:$0xf] %v521
      %526 = vst [vmem:[#allocation3 + $0x48] sm:$0xf] %v523
      %v527 = vld [vmem:[%s2] sm:$0x1]
      %v528 = vld [vmem:[#allocation3] sm:$0xff]
      %v529 = vld [vmem:[#allocation3 + $0x8] sm:$0xff]
      %v530 = vld [vmem:[#allocation3 + $0x10] sm:$0xff]
      %v531 = vld [vmem:[#allocation3 + $0x18] sm:$0xff]
      %v532 = vld [vmem:[#allocation3 + $0x20] sm:$0xff]
      %v533 = vld [vmem:[#allocation3 + $0x28] sm:$0xff]
      %v534 = vld [vmem:[#allocation3 + $0x30] sm:$0xff]
      %v535 = vld [vmem:[#allocation3 + $0x38] sm:$0xff]
      %v536 = vld [vmem:[#allocation3 + $0x40] sm:$0xf]
      %v537 = vld [vmem:[#allocation3 + $0x48] sm:$0xf]
      %v538 = vpack.c.bf16 %v530, %v528
      %v539 = vpack.c.bf16 %v531, %v529
      %v540 = vpack.c.bf16 %v534, %v532
      %v541 = vpack.c.bf16 %v535, %v533
      %v542 = vpack.c.bf16 %v536, %v536
      %v543 = vpack.c.bf16 %v537, %v537
      %v544 = vld [vmem:[%s3] sm:$0x3]
      %546 = vset.pattern.permute.xlu0 0
      %547 = vperm.xlu0 %546, %v544
      %v548 = vpop.permute.xlu0 %547
      %vm550 = vcmask 293888
      %v552 = vsel %vm550, %v527, 0
      %vm554 = vcmask 1041408
      %v556 = vsel %vm554, %v542, 0
      %v559 = vsel %vm554, %v543, 0
      %561 = vmatprep.subr.bf16.mxu0 %v539
      %562 = vmatpush1.bf16.msra.mxu0 %v538
      %563 = vmatprep.subr.bf16.mxu0 %v541
      %564 = vmatpush1.bf16.msra.mxu0 %v540
      %565 = vmatprep.subr.bf16.mxu0 %v559
      %566 = vmatpush1.bf16.msra.mxu0 %v556
      %567 = vmatprep.subr.bf16.mxu0 0
      %568 = vmatpush1.bf16.msra.mxu0 0
      %569 = vmatprep.subr.bf16.mxu0 0
      %570 = vmatpush1.bf16.msra.mxu0 0
      %571 = vmatprep.subr.bf16.mxu0 0
      %572 = vmatpush1.bf16.msra.mxu0 0
      %573 = vmatprep.subr.bf16.mxu0 0
      %574 = vmatpush1.bf16.msra.mxu0 0
      %575 = vmatprep.subr.bf16.mxu0 0
      %576 = vmatpush1.bf16.msra.mxu0 0
      %577 = vmatprep.subr.bf16.mxu0 0
      %578 = vmatpush1.bf16.msra.mxu0 0
      %579 = vmatprep.subr.bf16.mxu0 0
      %580 = vmatpush1.bf16.msra.mxu0 0
      %581 = vmatprep.subr.bf16.mxu0 0
      %582 = vmatpush1.bf16.msra.mxu0 0
      %583 = vmatprep.subr.bf16.mxu0 0
      %584 = vmatpush1.bf16.msra.mxu0 0
      %585 = vmatprep.subr.bf16.mxu0 0
      %586 = vmatpush1.bf16.msra.mxu0 0
      %587 = vmatprep.subr.bf16.mxu0 0
      %588 = vmatpush1.bf16.msra.mxu0 0
      %589 = vmatprep.subr.bf16.mxu0 0
      %590 = vmatpush1.bf16.msra.mxu0 0
      %591 = vmatprep.subr.bf16.mxu0 0
      %592 = vmatpush1.bf16.msra.mxu0 0
      %593 = vmatprep.mubr.bf16.mxu0 0
      %594 = vmatmul.mubr.bf16.gmra.mrb[0].mxu0 %v552
      %v595 = vpop.f32.mrb[0].mxu0
      %v596 = vadd.f32 %v548, %v595
      %v597 = vpop.f32.mrb[0].mxu0
      %v598 = vadd.f32 %v548, %v597
      %v599 = vpop.f32.mrb[0].mxu0
      %v600 = vpop.f32.mrb[0].mxu0
      %601 = vdwg.mxu0
      %v602 = vxor.u32 %v596, 2147483648
      %v603 = vxor.u32 %v598, 2147483648
      %v604 = vmul.f32 %v602, 1.442695
      %v605 = vpow.pop %v604
      %v606 = vmul.f32 %v603, 1.442695
      %v607 = vpow.pop %v606
      %v608 = vadd.f32 %v605, 1.0
      %v609 = vadd.f32 %v607, 1.0
      %v610 = vrcp.pop %v608
      %v611 = vmul.f32 1.0, %v610
      %v612 = vrcp.pop %v609
      %v613 = vmul.f32 1.0, %v612
      %v614 = vmul.f32 %v596, %v611
      %v615 = vmul.f32 %v598, %v613
      %616 = vst [vmem:[#allocation4] sm:$0x3] 0.0
      %617 = vst [vmem:[#allocation4 + $0x6] sm:$0x3] 0.0
      %v620 = vcombine.low %v614, %v615
      %v622 = vunpack.c.l.s4 1983009808
      %v623 = vunpack.c.0.s8 %v622
      %v624 = vlaneseq
      %v625 = vshrl.u32 %v624, 7
      %v626 = vsub.s32 %v623, %v625
      %v627 = vrot.slane %v620, %v626
      %629 = vst [vmem:[#allocation4 + $0x2] sm:$0xf] %v627
      %v630 = vld [vmem:[#allocation4] sm:$0xff]
      %v631 = vld [vmem:[%s1] ss:$8 sm:$0x3]
      %v633 = vlaneseq
      %v634 = vshrl.u32 %v633, 7
      %v635 = vsub.s32 0, %v634
      %v636 = vrot.slane %v631, %v635
      %v637 = vlaneseq
      %v638 = vshrl.u32 %v637, 7
      %v639 = vsub.s32 1, %v638
      %v640 = vrot.slane %v631, %v639
      %v641 = vcombine.low %v636, %v640
      %v643 = vunpack.c.l.s4 1983009808
      %v644 = vunpack.c.0.s8 %v643
      %v645 = vlaneseq
      %v646 = vshrl.u32 %v645, 7
      %v647 = vsub.s32 %v644, %v646
      %v648 = vrot.slane %v641, %v647
      %649 = vrot.lane.b32.xlu0 %v648, 111
      %v650 = vpop.permute.xlu0 %649
      %v651 = vrot.slane %v650, 6
      %v652 = vsel %vm273, %v651, %v650
      %v654 = vmul.f32 %v630, %v652
      %v656 = vcombine.high %v654, %v654
      %v658 = vunpack.c.l.s4 1983009808
      %v659 = vunpack.c.0.s8 %v658
      %v660 = vlaneseq
      %v661 = vshrl.u32 %v660, 7
      %v662 = vsub.s32 %v659, %v661
      %v663 = vrot.slane %v654, %v662
      %v665 = vunpack.c.l.s4 1983009808
      %v666 = vunpack.c.0.s8 %v665
      %v667 = vlaneseq
      %v668 = vshrl.u32 %v667, 7
      %v669 = vsub.s32 %v666, %v668
      %v670 = vrot.slane %v656, %v669
      %v671 = vcombine.high %v663, %v663
      %672 = vrot.lane.b32.xlu0 %v663, 17
      %v673 = vpop.permute.xlu0 %672
      %674 = vrot.lane.b32.xlu0 %v671, 17
      %v675 = vpop.permute.xlu0 %674
      %676 = vrot.lane.b32.xlu0 %v670, 17
      %v677 = vpop.permute.xlu0 %676
      %v678 = vsel %vm288, %v673, %v675
      %v679 = vsel %vm288, %v675, %v677
      %682 = vst [vmem:[#allocation5] sm:$0x3] %v678
      %683 = vst [vmem:[#allocation5 + $0x8] sm:$0x3] %v679
      %v684 = vld [vmem:[%s295] ss:$8 sm:$0x3]
      %v686 = vlaneseq
      %v687 = vshrl.u32 %v686, 7
      %v688 = vsub.s32 0, %v687
      %v689 = vrot.slane %v684, %v688
      %v690 = vlaneseq
      %v691 = vshrl.u32 %v690, 7
      %v692 = vsub.s32 1, %v691
      %v693 = vrot.slane %v684, %v692
      %v694 = vcombine.low %v689, %v693
      %v696 = vunpack.c.l.s4 1983009808
      %v697 = vunpack.c.0.s8 %v696
      %v698 = vlaneseq
      %v699 = vshrl.u32 %v698, 7
      %v700 = vsub.s32 %v697, %v699
      %v701 = vrot.slane %v694, %v700
      %702 = vrot.lane.b32.xlu0 %v701, 112
      %v703 = vpop.permute.xlu0 %702
      %v704 = vrot.slane %v703, 6
      %v705 = vsel %vm310, %v704, %v703
      %v707 = vmul.f32 %v630, %v705
      %v709 = vcombine.low %v707, %v707
      %v711 = vunpack.c.l.s4 1983009808
      %v712 = vunpack.c.0.s8 %v711
      %v713 = vlaneseq
      %v714 = vshrl.u32 %v713, 7
      %v715 = vsub.s32 %v712, %v714
      %v716 = vrot.slane %v709, %v715
      %v718 = vunpack.c.l.s4 1983009808
      %v719 = vunpack.c.0.s8 %v718
      %v720 = vlaneseq
      %v721 = vshrl.u32 %v720, 7
      %v722 = vsub.s32 %v719, %v721
      %v723 = vrot.slane %v707, %v722
      %v724 = vcombine.high %v716, %v716
      %725 = vrot.lane.b32.xlu0 %v716, 16
      %v726 = vpop.permute.xlu0 %725
      %727 = vrot.lane.b32.xlu0 %v724, 16
      %v728 = vpop.permute.xlu0 %727
      %729 = vrot.lane.b32.xlu0 %v723, 16
      %v730 = vpop.permute.xlu0 %729
      %v731 = vsel %vm326, %v726, %v728
      %v732 = vsel %vm326, %v728, %v730
      %735 = vst [vmem:[#allocation5] sm:$0xc] %v731
      %736 = vst [vmem:[#allocation5 + $0x8] sm:$0xc] %v732
      %v737 = vld [vmem:[%s333] ss:$8 sm:$0x3]
      %v739 = vlaneseq
      %v740 = vshrl.u32 %v739, 7
      %v741 = vsub.s32 0, %v740
      %v742 = vrot.slane %v737, %v741
      %v743 = vlaneseq
      %v744 = vshrl.u32 %v743, 7
      %v745 = vsub.s32 1, %v744
      %v746 = vrot.slane %v737, %v745
      %v747 = vcombine.low %v742, %v746
      %v749 = vunpack.c.l.s4 1983009808
      %v750 = vunpack.c.0.s8 %v749
      %v751 = vlaneseq
      %v752 = vshrl.u32 %v751, 7
      %v753 = vsub.s32 %v750, %v752
      %v754 = vrot.slane %v747, %v753
      %755 = vrot.lane.b32.xlu0 %v754, 113
      %v756 = vpop.permute.xlu0 %755
      %v757 = vrot.slane %v756, 6
      %v758 = vsel %vm348, %v757, %v756
      %v760 = vmul.f32 %v630, %v758
      %v762 = vcombine.high %v760, %v760
      %v764 = vunpack.c.l.s4 1983009808
      %v765 = vunpack.c.0.s8 %v764
      %v766 = vlaneseq
      %v767 = vshrl.u32 %v766, 7
      %v768 = vsub.s32 %v765, %v767
      %v769 = vrot.slane %v760, %v768
      %v771 = vunpack.c.l.s4 1983009808
      %v772 = vunpack.c.0.s8 %v771
      %v773 = vlaneseq
      %v774 = vshrl.u32 %v773, 7
      %v775 = vsub.s32 %v772, %v774
      %v776 = vrot.slane %v762, %v775
      %v777 = vcombine.low %v769, %v769
      %v778 = vcombine.low %v776, %v776
      %779 = vrot.lane.b32.xlu0 %v777, 15
      %v780 = vpop.permute.xlu0 %779
      %781 = vrot.lane.b32.xlu0 %v769, 15
      %v782 = vpop.permute.xlu0 %781
      %783 = vrot.lane.b32.xlu0 %v778, 15
      %v784 = vpop.permute.xlu0 %783
      %v785 = vsel %vm363, %v780, %v782
      %v786 = vsel %vm363, %v782, %v784
      %789 = vst [vmem:[#allocation5] sm:$0x30] %v785
      %790 = vst [vmem:[#allocation5 + $0x8] sm:$0x30] %v786
      %v791 = vld [vmem:[%s370] ss:$8 sm:$0x3]
      %v793 = vlaneseq
      %v794 = vshrl.u32 %v793, 7
      %v795 = vsub.s32 0, %v794
      %v796 = vrot.slane %v791, %v795
      %v797 = vlaneseq
      %v798 = vshrl.u32 %v797, 7
      %v799 = vsub.s32 1, %v798
      %v800 = vrot.slane %v791, %v799
      %v801 = vcombine.low %v796, %v800
      %v803 = vunpack.c.l.s4 1983009808
      %v804 = vunpack.c.0.s8 %v803
      %v805 = vlaneseq
      %v806 = vshrl.u32 %v805, 7
      %v807 = vsub.s32 %v804, %v806
      %v808 = vrot.slane %v801, %v807
      %809 = vrot.lane.b32.xlu0 %v808, 127
      %v810 = vpop.permute.xlu0 %809
      %v811 = vrot.slane %v810, 6
      %v812 = vsel %vm385, %v811, %v810
      %v814 = vmul.f32 %v630, %v812
      %v816 = vcombine.low %v814, %v814
      %v818 = vunpack.c.l.s4 1983009808
      %v819 = vunpack.c.0.s8 %v818
      %v820 = vlaneseq
      %v821 = vshrl.u32 %v820, 7
      %v822 = vsub.s32 %v819, %v821
      %v823 = vrot.slane %v816, %v822
      %v825 = vunpack.c.l.s4 1983009808
      %v826 = vunpack.c.0.s8 %v825
      %v827 = vlaneseq
      %v828 = vshrl.u32 %v827, 7
      %v829 = vsub.s32 %v826, %v828
      %v830 = vrot.slane %v814, %v829
      %v831 = vcombine.low %v823, %v823
      %v832 = vcombine.low %v830, %v830
      %833 = vrot.lane.b32.xlu0 %v831, 1
      %v834 = vpop.permute.xlu0 %833
      %835 = vrot.lane.b32.xlu0 %v823, 1
      %v836 = vpop.permute.xlu0 %835
      %837 = vrot.lane.b32.xlu0 %v832, 1
      %v838 = vpop.permute.xlu0 %837
      %v839 = vsel %vm401, %v834, %v836
      %v840 = vsel %vm401, %v836, %v838
      %843 = vst [vmem:[#allocation5] sm:$0xc0] %v839
      %844 = vst [vmem:[#allocation5 + $0x8] sm:$0xc0] %v840
      %v846 = vcombine.high %v630, %v630
      %v848 = vunpack.c.l.s4 1983009808
      %v849 = vunpack.c.0.s8 %v848
      %v850 = vlaneseq
      %v851 = vshrl.u32 %v850, 7
      %v852 = vsub.s32 %v849, %v851
      %v853 = vrot.slane %v630, %v852
      %v855 = vunpack.c.l.s4 1983009808
      %v856 = vunpack.c.0.s8 %v855
      %v857 = vlaneseq
      %v858 = vshrl.u32 %v857, 7
      %v859 = vsub.s32 %v856, %v858
      %v860 = vrot.slane %v846, %v859
      %v861 = vcombine.high %v853, %v853
      %864 = vst [vmem:[#allocation5 + $0x10] sm:$0x3] %v861
      %865 = vst [vmem:[#allocation5 + $0x18] sm:$0x3] %v860
      %v866 = vld [vmem:[%s414] ss:$8 sm:$0x3]
      %v868 = vlaneseq
      %v869 = vshrl.u32 %v868, 7
      %v870 = vsub.s32 0, %v869
      %v871 = vrot.slane %v866, %v870
      %v872 = vlaneseq
      %v873 = vshrl.u32 %v872, 7
      %v874 = vsub.s32 1, %v873
      %v875 = vrot.slane %v866, %v874
      %876 = vrot.lane.b32.xlu0 %v630, 127
      %v877 = vpop.permute.xlu0 %876
      %v878 = vrot.slane %v877, 2
      %v879 = vrot.slane %v877, 4
      %v880 = vsel %vm385, %v878, %v879
      %v882 = vcombine.low %v871, %v875
      %v884 = vunpack.c.l.s4 1983009808
      %v885 = vunpack.c.0.s8 %v884
      %v886 = vlaneseq
      %v887 = vshrl.u32 %v886, 7
      %v888 = vsub.s32 %v885, %v887
      %v889 = vrot.slane %v882, %v888
      %v891 = vmul.f32 %v880, %v889
      %v893 = vcombine.low %v891, %v891
      %v895 = vunpack.c.l.s4 1983009808
      %v896 = vunpack.c.0.s8 %v895
      %v897 = vlaneseq
      %v898 = vshrl.u32 %v897, 7
      %v899 = vsub.s32 %v896, %v898
      %v900 = vrot.slane %v893, %v899
      %v901 = vcombine.high %v900, %v900
      %904 = vst [vmem:[#allocation5 + $0x10] sm:$0xc] %v900
      %905 = vst [vmem:[#allocation5 + $0x18] sm:$0xc] %v901
      %v906 = vld [vmem:[%s443] ss:$8 sm:$0x3]
      %v908 = vlaneseq
      %v909 = vshrl.u32 %v908, 7
      %v910 = vsub.s32 0, %v909
      %v911 = vrot.slane %v906, %v910
      %v912 = vlaneseq
      %v913 = vshrl.u32 %v912, 7
      %v914 = vsub.s32 1, %v913
      %v915 = vrot.slane %v906, %v914
      %916 = vrot.lane.b32.xlu0 %v630, 113
      %v917 = vpop.permute.xlu0 %916
      %v918 = vrot.slane %v917, 2
      %v919 = vrot.slane %v917, 4
      %v920 = vsel %vm348, %v918, %v919
      %v922 = vcombine.low %v911, %v915
      %v924 = vunpack.c.l.s4 1983009808
      %v925 = vunpack.c.0.s8 %v924
      %v926 = vlaneseq
      %v927 = vshrl.u32 %v926, 7
      %v928 = vsub.s32 %v925, %v927
      %v929 = vrot.slane %v922, %v928
      %v931 = vmul.f32 %v920, %v929
      %v934 = vunpack.c.l.s4 1983009808
      %v935 = vunpack.c.0.s8 %v934
      %v936 = vlaneseq
      %v937 = vshrl.u32 %v936, 7
      %v938 = vsub.s32 %v935, %v937
      %v939 = vrot.slane %v931, %v938
      %v940 = vcombine.low %v939, %v939
      %943 = vst [vmem:[#allocation5 + $0x10] sm:$0x30] %v940
      %944 = vst [vmem:[#allocation5 + $0x18] sm:$0x30] %v939
      %v945 = vld [vmem:[%s471] ss:$8 sm:$0x3]
      %v947 = vlaneseq
      %v948 = vshrl.u32 %v947, 7
      %v949 = vsub.s32 0, %v948
      %v950 = vrot.slane %v945, %v949
      %v951 = vlaneseq
      %v952 = vshrl.u32 %v951, 7
      %v953 = vsub.s32 1, %v952
      %v954 = vrot.slane %v945, %v953
      %955 = vrot.lane.b32.xlu0 %v630, 112
      %v956 = vpop.permute.xlu0 %955
      %v957 = vrot.slane %v956, 2
      %v958 = vrot.slane %v956, 4
      %v959 = vsel %vm310, %v957, %v958
      %v961 = vcombine.low %v950, %v954
      %v963 = vunpack.c.l.s4 1983009808
      %v964 = vunpack.c.0.s8 %v963
      %v965 = vlaneseq
      %v966 = vshrl.u32 %v965, 7
      %v967 = vsub.s32 %v964, %v966
      %v968 = vrot.slane %v961, %v967
      %v970 = vmul.f32 %v959, %v968
      %v972 = vcombine.low %v970, %v970
      %v974 = vunpack.c.l.s4 1983009808
      %v975 = vunpack.c.0.s8 %v974
      %v976 = vlaneseq
      %v977 = vshrl.u32 %v976, 7
      %v978 = vsub.s32 %v975, %v977
      %v979 = vrot.slane %v972, %v978
      %v980 = vcombine.low %v979, %v979
      %983 = vst [vmem:[#allocation5 + $0x10] sm:$0xc0] %v980
      %984 = vst [vmem:[#allocation5 + $0x18] sm:$0xc0] %v979
      %v985 = vld [vmem:[%s499] ss:$8 sm:$0x3]
      %v987 = vlaneseq
      %v988 = vshrl.u32 %v987, 7
      %v989 = vsub.s32 0, %v988
      %v990 = vrot.slane %v985, %v989
      %v991 = vlaneseq
      %v992 = vshrl.u32 %v991, 7
      %v993 = vsub.s32 1, %v992
      %v994 = vrot.slane %v985, %v993
      %995 = vrot.lane.b32.xlu0 %v630, 111
      %v996 = vpop.permute.xlu0 %995
      %v997 = vrot.slane %v996, 2
      %v998 = vrot.slane %v996, 4
      %v999 = vsel %vm273, %v997, %v998
      %v1001 = vcombine.low %v990, %v994
      %v1003 = vunpack.c.l.s4 1983009808
      %v1004 = vunpack.c.0.s8 %v1003
      %v1005 = vlaneseq
      %v1006 = vshrl.u32 %v1005, 7
      %v1007 = vsub.s32 %v1004, %v1006
      %v1008 = vrot.slane %v1001, %v1007
      %v1010 = vmul.f32 %v999, %v1008
      %v1013 = vunpack.c.l.s4 1983009808
      %v1014 = vunpack.c.0.s8 %v1013
      %v1015 = vlaneseq
      %v1016 = vshrl.u32 %v1015, 7
      %v1017 = vsub.s32 %v1014, %v1016
      %v1018 = vrot.slane %v1010, %v1017
      %v1019 = vcombine.high %v1018, %v1018
      %1022 = vst [vmem:[#allocation5 + $0x20] sm:$0x3] %v1018
      %1023 = vst [vmem:[#allocation5 + $0x28] sm:$0x3] %v1019
      %v1024 = vld [vmem:[%s4] sm:$0x3]
      %v1025 = vld [vmem:[#allocation5] sm:$0xff]
      %v1026 = vld [vmem:[#allocation5 + $0x8] sm:$0xff]
      %v1027 = vld [vmem:[#allocation5 + $0x10] sm:$0xff]
      %v1028 = vld [vmem:[#allocation5 + $0x18] sm:$0xff]
      %v1029 = vld [vmem:[#allocation5 + $0x20] sm:$0x3]
      %v1030 = vld [vmem:[#allocation5 + $0x28] sm:$0x3]
      %v1031 = vpack.c.bf16 %v1027, %v1025
      %v1032 = vpack.c.bf16 %v1028, %v1026
      %v1033 = vpack.c.bf16 %v1029, %v1029
      %v1034 = vpack.c.bf16 %v1030, %v1030
      %v1035 = vld [vmem:[%s5] sm:$0xf]
      %1037 = vset.pattern.permute.xlu0 0
      %1038 = vperm.xlu0 %1037, %v1035
      %v1039 = vpop.permute.xlu0 %1038
      %vm1041 = vcmask 146432
      %v1043 = vsel %vm1041, %v1024, 0
      %vm1045 = vcmask 1040384
      %v1047 = vsel %vm1045, %v1033, 0
      %v1050 = vsel %vm1045, %v1034, 0
      %1052 = vmatprep.subr.bf16.mxu0 %v1032
      %1053 = vmatpush1.bf16.msra.mxu0 %v1031
      %1054 = vmatprep.subr.bf16.mxu0 %v1050
      %1055 = vmatpush1.bf16.msra.mxu0 %v1047
      %1056 = vmatprep.subr.bf16.mxu0 0
      %1057 = vmatpush1.bf16.msra.mxu0 0
      %1058 = vmatprep.subr.bf16.mxu0 0
      %1059 = vmatpush1.bf16.msra.mxu0 0
      %1060 = vmatprep.subr.bf16.mxu0 0
      %1061 = vmatpush1.bf16.msra.mxu0 0
      %1062 = vmatprep.subr.bf16.mxu0 0
      %1063 = vmatpush1.bf16.msra.mxu0 0
      %1064 = vmatprep.subr.bf16.mxu0 0
      %1065 = vmatpush1.bf16.msra.mxu0 0
      %1066 = vmatprep.subr.bf16.mxu0 0
      %1067 = vmatpush1.bf16.msra.mxu0 0
      %1068 = vmatprep.subr.bf16.mxu0 0
      %1069 = vmatpush1.bf16.msra.mxu0 0
      %1070 = vmatprep.subr.bf16.mxu0 0
      %1071 = vmatpush1.bf16.msra.mxu0 0
      %1072 = vmatprep.subr.bf16.mxu0 0
      %1073 = vmatpush1.bf16.msra.mxu0 0
      %1074 = vmatprep.subr.bf16.mxu0 0
      %1075 = vmatpush1.bf16.msra.mxu0 0
      %1076 = vmatprep.subr.bf16.mxu0 0
      %1077 = vmatpush1.bf16.msra.mxu0 0
      %1078 = vmatprep.subr.bf16.mxu0 0
      %1079 = vmatpush1.bf16.msra.mxu0 0
      %1080 = vmatprep.subr.bf16.mxu0 0
      %1081 = vmatpush1.bf16.msra.mxu0 0
      %1082 = vmatprep.subr.bf16.mxu0 0
      %1083 = vmatpush1.bf16.msra.mxu0 0
      %1084 = vmatprep.mubr.bf16.mxu0 0
      %1085 = vmatmul.mubr.bf16.gmra.mrb[0].mxu0 %v1043
      %v1086 = vpop.f32.mrb[0].mxu0
      %v1087 = vadd.f32 %v1039, %v1086
      %v1088 = vpop.f32.mrb[0].mxu0
      %v1089 = vadd.f32 %v1039, %v1088
      %v1090 = vpop.f32.mrb[0].mxu0
      %v1091 = vpop.f32.mrb[0].mxu0
      %1092 = vdwg.mxu0
      %v1093 = vxor.u32 %v1087, 2147483648
      %v1094 = vxor.u32 %v1089, 2147483648
      %v1095 = vmul.f32 %v1093, 1.442695
      %v1096 = vpow.pop %v1095
      %v1097 = vmul.f32 %v1094, 1.442695
      %v1098 = vpow.pop %v1097
      %v1099 = vadd.f32 %v1096, 1.0
      %v1100 = vadd.f32 %v1098, 1.0
      %v1101 = vrcp.pop %v1099
      %v1102 = vmul.f32 1.0, %v1101
      %v1103 = vrcp.pop %v1100
      %v1104 = vmul.f32 1.0, %v1103
      %v1105 = vmul.f32 %v1087, %v1102
      %v1106 = vmul.f32 %v1089, %v1104
      %v1108 = vcombine.high %v253, %v253
      %v1110 = vadd.f32 %v1105, %v253
      %v1111 = vadd.f32 %v1106, %v1108
      %v1114 = vcombine.low %v1110, %v1111
      %1116 = vst [vmem:[%s251] sm:$0xff] %v1114
      %p1117 = scmp.lt.s32.totalorder %s17, 1
      %s1118 = scalar_select %p1117, %s17, 1
      %s1119 = smul.addr %s1118, 2
      %s1120 = smul.addr %s1119, 4
      %s1121 = scalar_lea.vmem %s6, %s1120
      // Predicated region
      $region45: #{_lambda_.1} parent=43 // pred_check
        %p1122 = pneg %p166
      $region46: #{_lambda_.1} parent=43 // pred_check_branch
        %1124 = sbr.rel (%p1122) target = $region48
      $region47: #{_lambda_.1} parent=43 // pred_region
        _
      $region48: #{_lambda_.1} parent=43 // pred_fallthru
        _
    $region44: #{_lambda_.1} parent=5 // pred_fallthru
      _
    %p1125 = scmp.le.s32.totalorder 2, %s12
    // Predicated region
    $region49: #{_lambda_.1} parent=5 // pred_check
      %p1126 = pneg %p1125
    $region50: #{_lambda_.1} parent=5 // pred_check_branch
      %1128 = sbr.rel (%p1126) target = $region52
    $region51: #{_lambda_.1} parent=5 // pred_region
      %s1129 = ssub.s32 %s12, 2
      // Predicated region
      $region53: #{_lambda_.1} parent=51 // pred_check
        %p1130 = pneg %p172
      $region54: #{_lambda_.1} parent=51 // pred_check_branch
        %1132 = sbr.rel (%p1130) target = $region56
      $region55: #{_lambda_.1} parent=51 // pred_region
        %p1133 = scmp.lt.s32.totalorder %s18, 1
        %s1134 = scalar_select %p1133, %s18, 1
        %s1135 = smul.addr %s1134, 2
        %s1136 = smul.addr %s1135, 4
        %s1137 = scalar_lea.vmem %s6, %s1136
      $region56: #{_lambda_.1} parent=51 // pred_fallthru
        _
    $region52: #{_lambda_.1} parent=5 // pred_fallthru
      _
  $region6: #{_lambda_.1} parent=0 // loop_footer
    %s16 = sadd.s32 1, %s12
  $region7: #{_lambda_.1} parent=0 // loop_footer_branch
    %11 = sbr.rel target = $region3
  $region8: #{_lambda_.1} parent=0 // loop_exit
    _

</llo_original>
